<compile_context>
chip_gen: v6e
topology: v6e:2x2x1
jax: 0.10.0
libtpu: 0.0.40
codegen_flags: <defaults>
</compile_context>

<pallas_src>
import functools

import jax
import jax.numpy as jnp
from jax.experimental import pallas as pl
from jax.experimental.pallas import tpu as pltpu


def _round_up(v: int, m: int) -> int:
    return (v + m - 1) // m * m


def _cluster_assignment_kernel(x_ref, ct_ref, cn_ref, o_ref, *,
                               inv_alpha: float, power: float):
    # x_ref : [TB, Dp]  batch tile (pipelined over the grid), D zero-padded
    # ct_ref: [Dp, Kp]  transposed, padded cluster centers (resident; MXU-native orientation)
    # cn_ref: [1, Kp]   precomputed ||c||^2, padded columns hold a 1e30 sentinel (resident)
    # o_ref : [TB, Kp]  lane-dense output tile
    x = x_ref[...]

    # ||x - c||^2 = ||x||^2 + ||c||^2 - 2 x.c ; the heavy term goes to the MXU.
    x_norm = jnp.sum(x * x, axis=1, keepdims=True)                          # [TB, 1]
    xc = jnp.dot(x, ct_ref[...], preferred_element_type=jnp.float32)        # [TB, Kp]
    norm_sq = jnp.maximum(x_norm + cn_ref[...] - 2.0 * xc, 0.0)             # clamp cancellation

    # Student's t numerator; reciprocal on the EUP slot (idle otherwise).
    # Padded columns see 1 + ~1e30 -> reciprocal ~1e-30 -> no denominator pollution.
    if inv_alpha != 1.0:          # alpha == 1.0 default -> skip the full-tile multiply
        t = 1.0 + norm_sq * inv_alpha
    else:
        t = 1.0 + norm_sq
    numerator = pl.reciprocal(t, approx=True)                               # [TB, Kp]
    if power != 1.0:              # alpha == 1.0 -> power == 1.0 -> skip exp/log entirely
        numerator = jnp.exp(power * jnp.log(numerator))

    # Exact normalization: denom is only [TB, 1], so exact divide is negligible and keeps
    # rows summing to 1 to fp32 rounding (important for downstream KL / target distribution).
    denom = jnp.sum(numerator, axis=1, keepdims=True)                       # [TB, 1]
    o_ref[...] = numerator * (1.0 / denom)


def cluster_assignment(x: jax.Array, cluster_centers: jax.Array, alpha: float = 1.0,
                       block_b: int = 512,
                       vmem_budget_bytes: int = 40 * 1024 * 1024) -> jax.Array:
    """Soft assignment q for x [B, D] against cluster_centers [K, D] -> [B, K] (float32)."""
    B, D = x.shape
    K, D2 = cluster_centers.shape
    assert D == D2, "embedding dimension mismatch"

    # Lane-dense padding: K and D both rounded to multiples of 128 so the VMEM footprint
    # estimate matches the real (8,128)-tiled layout and all DMAs / stores are unmasked.
    Kp = _round_up(K, 128)
    Dp = _round_up(D, 128)

    def _vmem_bytes(tb: int) -> int:
        # double-buffered streamed x / out tiles + resident centers / c_norm (counted x2:
        # Pallas may still allocate two buffers for constant-index inputs), all f32.
        return 4 * (2 * tb * Dp + 2 * Dp * Kp + 2 * 8 * Kp + 2 * tb * Kp)

    # TODO(synk): add a K-tiled (two-pass or accumulator) path for huge K*D where the resident
    # centers alone exceed ~half the v7x VMEM budget; at typical DEC sizes they fit easily.

    TB = min(block_b, _round_up(B, 8))
    while TB > 8 and _vmem_bytes(TB) > vmem_budget_bytes:
        TB //= 2
    TB = max(8, _round_up(TB, 8))
    # Ensure >= 2 grid steps whenever possible so dimension_semantics=("parallel",) actually
    # splits the batch across both TensorCores on v7x.
    while TB > 8 and pl.cdiv(_round_up(B, 8), TB) < 2:
        TB = max(8, _round_up(TB // 2, 8))
    Bp = _round_up(B, TB)

    xp = x.astype(jnp.float32)
    if (Bp != B) or (Dp != D):
        xp = jnp.pad(xp, ((0, Bp - B), (0, Dp - D)))
    cp = cluster_centers.astype(jnp.float32)
    if (Kp != K) or (Dp != D):
        cp = jnp.pad(cp, ((0, Kp - K), (0, Dp - D)))

    # ||c||^2 hoisted out of the kernel loop; padded cluster columns get a large finite
    # sentinel so their numerator reciprocal is ~1e-30 (no in-kernel mask needed).
    c_norm = jnp.sum(cp * cp, axis=1)                                       # [Kp]
    if Kp != K:
        c_norm = jnp.where(jnp.arange(Kp) < K, c_norm, jnp.float32(1e30))
    c_norm = c_norm[None, :]                                                # [1, Kp]

    # MXU-native RHS orientation [contraction, N]; avoids per-step relayout of the residents.
    ct = cp.T                                                               # [Dp, Kp]

    power = float(alpha + 1.0) / 2.0
    kernel = functools.partial(_cluster_assignment_kernel,
                               inv_alpha=1.0 / float(alpha), power=power)

    cost = pl.CostEstimate(
        flops=2 * Bp * Kp * Dp + 5 * Bp * Kp,
        transcendentals=Bp * Kp * (1 if power == 1.0 else 3) + Bp,
        bytes_accessed=4 * (Bp * Dp + Dp * Kp + Kp + Bp * Kp),
    )

    q_pad = pl.pallas_call(
        kernel,
        out_shape=jax.ShapeDtypeStruct((Bp, Kp), jnp.float32),
        grid=(Bp // TB,),
        in_specs=[
            pl.BlockSpec((TB, Dp), lambda i: (i, 0)),   # batch tile, pipelined
            pl.BlockSpec((Dp, Kp), lambda i: (0, 0)),   # centers^T, resident
            pl.BlockSpec((1, Kp), lambda i: (0, 0)),    # ||c||^2 (+sentinels), resident
        ],
        out_specs=pl.BlockSpec((TB, Kp), lambda i: (i, 0)),
        compiler_params=pltpu.CompilerParams(
            dimension_semantics=("parallel",),           # megacore sharding on v7x
            vmem_limit_bytes=min(vmem_budget_bytes + 8 * 1024 * 1024, 100 * 1024 * 1024),
        ),
        cost_estimate=cost,
    )(xp, ct, c_norm)

    if Bp == B and Kp == K:
        return q_pad
    # Padding occurred: slice back to the module's [B, K] contract. For a fused pipeline,
    # prefer consuming the padded [Bp, Kp] layout downstream to avoid this extra HBM pass.
    return q_pad[:B, :K]


def init_cluster_centers(key: jax.Array, cluster_number: int, embedding_dimension: int) -> jax.Array:
    # Xavier / Glorot uniform for a [K, D] tensor (deterministic synthetic init).
    fan_out, fan_in = cluster_number, embedding_dimension
    bound = (6.0 / (fan_in + fan_out)) ** 0.5
    return jax.random.uniform(
        key, (cluster_number, embedding_dimension), dtype=jnp.float32,
        minval=-bound, maxval=bound,
    )


def cluster_assignment_ref(x, centers, alpha=1.0):
    # Pure-JAX reference (same semantics as the PyTorch forward).
    norm_squared = jnp.sum((x[:, None, :] - centers[None, :, :]) ** 2, axis=2)
    numerator = 1.0 / (1.0 + norm_squared / alpha)
    power = (alpha + 1.0) / 2.0
    numerator = numerator ** power
    return numerator / jnp.sum(numerator, axis=1, keepdims=True)


if __name__ == "__main__":
    key = jax.random.PRNGKey(0)
    k_x, k_c = jax.random.split(key)

    batch = 8
    cluster_number = 16
    embedding_dimension = 32
    alpha = 1.0

    x = jax.random.normal(k_x, (batch, embedding_dimension), dtype=jnp.float32)
    centers = init_cluster_centers(k_c, cluster_number, embedding_dimension)

    q = cluster_assignment(x, centers, alpha=alpha)
    q = jax.block_until_ready(q)

    q_ref = cluster_assignment_ref(x, centers, alpha=alpha)
    assert q.shape == (batch, cluster_number)
    # numerator uses the EUP approx reciprocal -> slightly relaxed tolerance vs exact reference
    assert jnp.allclose(q, q_ref, atol=2e-3, rtol=2e-3), "mismatch vs reference"
    # normalization is exact -> rows sum to 1 to fp32 rounding
    assert jnp.allclose(jnp.sum(q, axis=1), jnp.ones((batch,)), atol=1e-5), "rows must sum to 1"

    print("KERNEL_OK")
</pallas_src>

<mosaic_0001>
module attributes {stable_mosaic.version = 11 : i64} {
  func.func @_cluster_assignment_kernel(%arg0: i32, %arg1: memref<8x128xf32, #tpu.memory_space<vmem>>, %arg2: memref<128x128xf32, #tpu.memory_space<vmem>>, %arg3: memref<1x128xf32, #tpu.memory_space<vmem>>, %arg4: memref<8x128xf32, #tpu.memory_space<vmem>>) attributes {dimension_semantics = [#tpu.dimension_semantics<parallel>], iteration_bounds = array<i64: 1>, scalar_prefetch = 0 : i64, scratch_operands = 0 : i64, tpu.core_type = #tpu.core_type<tc>, window_params = [{transform_indices = @transform_0, window_bounds = array<i64: 8, 128>}, {pipeline_mode = #tpu.pipeline_mode<synchronous>, transform_indices = @transform_1, window_bounds = array<i64: 128, 128>}, {pipeline_mode = #tpu.pipeline_mode<synchronous>, transform_indices = @transform_2, window_bounds = array<i64: 1, 128>}, {transform_indices = @transform_3, window_bounds = array<i64: 8, 128>}]} {
    %c0 = arith.constant 0 : index
    %c0_0 = arith.constant 0 : index
    %0 = vector.load %arg1[%c0, %c0_0] : memref<8x128xf32, #tpu.memory_space<vmem>>, vector<8x128xf32>
    %1 = arith.mulf %0, %0 : vector<8x128xf32>
    %cst = arith.constant dense<0.000000e+00> : vector<8xf32>
    %2 = vector.multi_reduction <add>, %1, %cst [1] : vector<8x128xf32> to vector<8xf32>
    %3 = vector.shape_cast %2 : vector<8xf32> to vector<8x1xf32>
    %c0_1 = arith.constant 0 : index
    %c0_2 = arith.constant 0 : index
    %4 = vector.load %arg2[%c0_1, %c0_2] : memref<128x128xf32, #tpu.memory_space<vmem>>, vector<128x128xf32>
    %cst_3 = arith.constant dense<0.000000e+00> : vector<8x128xf32>
    %5 = tpu.matmul %0, %4, %cst_3 {dimension_numbers = #tpu.dot_dimension_numbers<[1], [0], [0], [1], [0, 0, 1, 1], [], []>} : vector<8x128xf32>, vector<128x128xf32>, vector<8x128xf32> -> vector<8x128xf32>
    %c0_4 = arith.constant 0 : index
    %c0_5 = arith.constant 0 : index
    %6 = vector.load %arg3[%c0_4, %c0_5] : memref<1x128xf32, #tpu.memory_space<vmem>>, vector<1x128xf32>
    %7 = vector.broadcast %3 : vector<8x1xf32> to vector<8x128xf32>
    %8 = vector.broadcast %6 : vector<1x128xf32> to vector<8x128xf32>
    %9 = arith.addf %7, %8 : vector<8x128xf32>
    %cst_6 = arith.constant 2.000000e+00 : f32
    %10 = vector.broadcast %cst_6 : f32 to vector<8x128xf32>
    %11 = arith.mulf %10, %5 : vector<8x128xf32>
    %12 = arith.subf %9, %11 : vector<8x128xf32>
    %cst_7 = arith.constant 0.000000e+00 : f32
    %13 = vector.broadcast %cst_7 : f32 to vector<8x128xf32>
    %14 = arith.maximumf %12, %13 : vector<8x128xf32>
    %cst_8 = arith.constant 1.000000e+00 : f32
    %15 = vector.broadcast %cst_8 : f32 to vector<8x128xf32>
    %16 = arith.addf %15, %14 : vector<8x128xf32>
    %17 = tpu.reciprocal %16 {approx = true} : vector<8x128xf32> -> vector<8x128xf32>
    %cst_9 = arith.constant dense<0.000000e+00> : vector<8xf32>
    %18 = vector.multi_reduction <add>, %17, %cst_9 [1] : vector<8x128xf32> to vector<8xf32>
    %19 = vector.shape_cast %18 : vector<8xf32> to vector<8x1xf32>
    %cst_10 = arith.constant 1.000000e+00 : f32
    %20 = vector.broadcast %cst_10 : f32 to vector<8x1xf32>
    %21 = arith.divf %20, %19 : vector<8x1xf32>
    %22 = vector.broadcast %21 : vector<8x1xf32> to vector<8x128xf32>
    %23 = arith.mulf %17, %22 : vector<8x128xf32>
    %c0_11 = arith.constant 0 : index
    %c0_12 = arith.constant 0 : index
    %24 = vector.load %arg4[%c0_11, %c0_12] : memref<8x128xf32, #tpu.memory_space<vmem>>, vector<8x128xf32>
    tpu.vector_store %arg4[%c0_11, %c0_12], %23 {strides = array<i32>} : memref<8x128xf32, #tpu.memory_space<vmem>>, vector<8x128xf32>,
    return
  }
  func.func @transform_0(%arg0: i32) -> (i32, i32) {
    %c0_i32 = arith.constant 0 : i32
    %c0_i32_0 = arith.constant 0 : i32
    return %arg0, %c0_i32 : i32, i32
  }
  func.func @transform_1(%arg0: i32) -> (i32, i32) {
    %c0_i32 = arith.constant 0 : i32
    %c0_i32_0 = arith.constant 0 : i32
    %c0_i32_1 = arith.constant 0 : i32
    return %c0_i32, %c0_i32_0 : i32, i32
  }
  func.func @transform_2(%arg0: i32) -> (i32, i32) {
    %c0_i32 = arith.constant 0 : i32
    %c0_i32_0 = arith.constant 0 : i32
    %c0_i32_1 = arith.constant 0 : i32
    return %c0_i32, %c0_i32_0 : i32, i32
  }
  func.func @transform_3(%arg0: i32) -> (i32, i32) {
    %c0_i32 = arith.constant 0 : i32
    %c0_i32_0 = arith.constant 0 : i32
    return %arg0, %c0_i32 : i32, i32
  }
}

</mosaic_0001>

<llo_original>
// kernel: tpu_custom_call.1
$region0: #{tpu_custom_call.1}
  #allocation0 [shape = 'u32[]', space=smem, size = 0x4, offset = 0x4, fixed_abs, tag = 'smem constant byte address 0x4 - core index']
  #allocation1 [shape = 'u32[144,128]{1,0:T(1,128)}', space=vmem, size = 0x12000, scoped, tag = 'internal scratch']
  %s0 = inlined_call_operand.hbm [shape: f32[8,128], index: 0, kind: input, shape index: {}]
  %s1 = inlined_call_operand.hbm [shape: f32[128,128], index: 1, kind: input, shape index: {}]
  %s2 = inlined_call_operand.vmem [shape: f32[1,128], index: 2, kind: input, shape index: {}]
  %s3 = inlined_call_operand.hbm [shape: f32[8,128], index: 3, kind: output, shape index: {}]
  %s4 = sld [smem:[#allocation0]]
  $region30: #{tpu_custom_call.1} parent=0
    _
  %s6 = ssub.s32 1, %s4
  %s7 = scalar_select 0, %s6, %s4
  $region1: #{tpu_custom_call.1} parent=0
    #allocation2 [shape = 'u8[4096]{0}', space=vmem, size = 0x1000, scoped, tag = 'input window, operand 0, single buffered']
    #allocation3 [shape = 's32[1]{0}', space=sflag, size = 0x4, scoped, tag = 'scoped memory for tpu_custom_call.1']
    #allocation4 [shape = 's32[1]{0}', space=sflag, size = 0x4, scoped, tag = 'scoped memory for tpu_custom_call.1']
    #allocation5 [shape = 'u8[65536]{0}', space=vmem, size = 0x10000, scoped, tag = 'input window, operand 1, single buffered']
    #allocation6 [shape = 's32[1]{0}', space=sflag, size = 0x4, scoped, tag = 'scoped memory for tpu_custom_call.1']
    #allocation7 [shape = 'u8[4096]{0}', space=vmem, size = 0x1000, scoped, tag = 'output window, operand 0, single buffered']
    %8 = vsyncpa [#allocation3], 0
    %9 = vsyncpa [#allocation6], 0
    %10 = vsyncpa [#allocation4], 0
    // Predicated region
    $region2: #{tpu_custom_call.1} parent=1 // pred_check
      _
    $region3: #{tpu_custom_call.1} parent=1 // pred_check_branch
      %12 = sbr.rel (0) target = $region5
    $region4: #{tpu_custom_call.1} parent=1 // pred_region
      %s14 = ssub.s32 128, 128
      %15 = vsyncadd [#allocation3], %s14
      %s17 = sshll.u32 [#allocation2], 4
      %s18 = int_to_ptr.vmem [resolvable:$true] %s17
      %20 = dma.hbm_to_vmem [thread:$0]  %s0, 128, %s18, [#allocation3]
    $region5: #{tpu_custom_call.1} parent=1 // pred_fallthru
      _
    // Predicated region
    $region6: #{tpu_custom_call.1} parent=1 // pred_check
      _
    $region7: #{tpu_custom_call.1} parent=1 // pred_check_branch
      %22 = sbr.rel (0) target = $region9
    $region8: #{tpu_custom_call.1} parent=1 // pred_region
      %s24 = ssub.s32 2048, 2048
      %25 = vsyncadd [#allocation6], %s24
      %s26 = sshll.u32 [#allocation5], 4
      %s27 = int_to_ptr.vmem [resolvable:$true] %s26
      %32 = dma.hbm_to_vmem [thread:$0]  %s1, 2048, %s27, [#allocation6], 128, 128, 8
    $region9: #{tpu_custom_call.1} parent=1 // pred_fallthru
      _
    // Predicated region
    $region10: #{tpu_custom_call.1} parent=1 // pred_check
      _
    $region11: #{tpu_custom_call.1} parent=1 // pred_check_branch
      %34 = sbr.rel (0) target = $region13
    $region12: #{tpu_custom_call.1} parent=1 // pred_region
      _
    $region13: #{tpu_custom_call.1} parent=1 // pred_fallthru
      _
    // Predicated region
    $region14: #{tpu_custom_call.1} parent=1 // pred_check
      _
    $region15: #{tpu_custom_call.1} parent=1 // pred_check_branch
      %36 = sbr.rel (0) target = $region17
    $region16: #{tpu_custom_call.1} parent=1 // pred_region
      %37 = dma.done [#allocation3], 128
    $region17: #{tpu_custom_call.1} parent=1 // pred_fallthru
      _
    // Predicated region
    $region18: #{tpu_custom_call.1} parent=1 // pred_check
      _
    $region19: #{tpu_custom_call.1} parent=1 // pred_check_branch
      %39 = sbr.rel (0) target = $region21
    $region20: #{tpu_custom_call.1} parent=1 // pred_region
      %40 = dma.done [#allocation6], 2048
    $region21: #{tpu_custom_call.1} parent=1 // pred_fallthru
      _
    %v41 = vld [vmem:[#allocation2] sm:$0xff]
    %v42 = vmul.f32 %v41, %v41
    %43 = vadd.xlane.f32.xlu0 %v42
    %v44 = vpop.xlane.xlu0 %43
    %v45 = vld [vmem:[#allocation5] sm:$0xff]
    %v46 = vld [vmem:[#allocation5 + $0x8] sm:$0xff]
    %v47 = vld [vmem:[#allocation5 + $0x10] sm:$0xff]
    %v48 = vld [vmem:[#allocation5 + $0x18] sm:$0xff]
    %v49 = vld [vmem:[#allocation5 + $0x20] sm:$0xff]
    %v50 = vld [vmem:[#allocation5 + $0x28] sm:$0xff]
    %v51 = vld [vmem:[#allocation5 + $0x30] sm:$0xff]
    %v52 = vld [vmem:[#allocation5 + $0x38] sm:$0xff]
    %v53 = vld [vmem:[#allocation5 + $0x40] sm:$0xff]
    %v54 = vld [vmem:[#allocation5 + $0x48] sm:$0xff]
    %v55 = vld [vmem:[#allocation5 + $0x50] sm:$0xff]
    %v56 = vld [vmem:[#allocation5 + $0x58] sm:$0xff]
    %v57 = vld [vmem:[#allocation5 + $0x60] sm:$0xff]
    %v58 = vld [vmem:[#allocation5 + $0x68] sm:$0xff]
    %v59 = vld [vmem:[#allocation5 + $0x70] sm:$0xff]
    %v60 = vld [vmem:[#allocation5 + $0x78] sm:$0xff]
    %61 = vmatprep.subr.mxu0 0.0
    %62 = vmatpush1.msra.mxu0 %v60
    %63 = vmatprep.subr.mxu0 0.0
    %64 = vmatpush1.msra.mxu0 %v59
    %65 = vmatprep.subr.mxu0 0.0
    %66 = vmatpush1.msra.mxu0 %v58
    %67 = vmatprep.subr.mxu0 0.0
    %68 = vmatpush1.msra.mxu0 %v57
    %69 = vmatprep.subr.mxu0 0.0
    %70 = vmatpush1.msra.mxu0 %v56
    %71 = vmatprep.subr.mxu0 0.0
    %72 = vmatpush1.msra.mxu0 %v55
    %73 = vmatprep.subr.mxu0 0.0
    %74 = vmatpush1.msra.mxu0 %v54
    %75 = vmatprep.subr.mxu0 0.0
    %76 = vmatpush1.msra.mxu0 %v53
    %77 = vmatprep.subr.mxu0 0.0
    %78 = vmatpush1.msra.mxu0 %v52
    %79 = vmatprep.subr.mxu0 0.0
    %80 = vmatpush1.msra.mxu0 %v51
    %81 = vmatprep.subr.mxu0 0.0
    %82 = vmatpush1.msra.mxu0 %v50
    %83 = vmatprep.subr.mxu0 0.0
    %84 = vmatpush1.msra.mxu0 %v49
    %85 = vmatprep.subr.mxu0 0.0
    %86 = vmatpush1.msra.mxu0 %v48
    %87 = vmatprep.subr.mxu0 0.0
    %88 = vmatpush1.msra.mxu0 %v47
    %89 = vmatprep.subr.mxu0 0.0
    %90 = vmatpush1.msra.mxu0 %v46
    %91 = vmatprep.subr.mxu0 0.0
    %92 = vmatpush1.msra.mxu0 %v45
    %93 = vmatprep.subr.mxu0 0.0
    %94 = vmatpush2.msra.mxu0 0.0
    %95 = vmatprep.subr.mxu0 0.0
    %96 = vmatpush2.msra.mxu0 0.0
    %97 = vmatprep.subr.mxu0 0.0
    %98 = vmatpush2.msra.mxu0 0.0
    %99 = vmatprep.subr.mxu0 0.0
    %100 = vmatpush2.msra.mxu0 0.0
    %101 = vmatprep.subr.mxu0 0.0
    %102 = vmatpush2.msra.mxu0 0.0
    %103 = vmatprep.subr.mxu0 0.0
    %104 = vmatpush2.msra.mxu0 0.0
    %105 = vmatprep.subr.mxu0 0.0
    %106 = vmatpush2.msra.mxu0 0.0
    %107 = vmatprep.subr.mxu0 0.0
    %108 = vmatpush2.msra.mxu0 0.0
    %109 = vmatprep.subr.mxu0 0.0
    %110 = vmatpush2.msra.mxu0 0.0
    %111 = vmatprep.subr.mxu0 0.0
    %112 = vmatpush2.msra.mxu0 0.0
    %113 = vmatprep.subr.mxu0 0.0
    %114 = vmatpush2.msra.mxu0 0.0
    %115 = vmatprep.subr.mxu0 0.0
    %116 = vmatpush2.msra.mxu0 0.0
    %117 = vmatprep.subr.mxu0 0.0
    %118 = vmatpush2.msra.mxu0 0.0
    %119 = vmatprep.subr.mxu0 0.0
    %120 = vmatpush2.msra.mxu0 0.0
    %121 = vmatprep.subr.mxu0 0.0
    %122 = vmatpush2.msra.mxu0 0.0
    %123 = vmatprep.subr.mxu0 0.0
    %124 = vmatpush2.msra.mxu0 0.0
    %125 = vmatprep.mubr.f32.mxu0 0.0
    %126 = vmatmul.mubr.f32.gmra.mxu0 %v41
    %v127 = vpop.f32.mrf.mxu0
    %v128 = vadd.f32 0.0, %v127
    %v129 = vpop.f32.mrf.mxu0
    %130 = vdwg.mxu0
    %v131 = vld [vmem:[%s2] sm:$0x1]
    %v133 = vlaneseq
    %v134 = vshrl.u32 %v133, 7
    %v135 = vsub.s32 0, %v134
    %v136 = vrot.slane %v131, %v135
    %v138 = vadd.f32 %v44, %v136
    %v139 = vmul.f32 %v128, 2.0
    %v140 = vsub.f32 %v138, %v139
    %v141 = vmax.f32 %v140, 0.0
    %v142 = vadd.f32 %v141, 1.0
    %v143 = vrcp.pop %v142
    %144 = vadd.xlane.f32.xlu0 %v143
    %v145 = vpop.xlane.xlu0 %144
    %v146 = vrcp.pop %v145
    %v147 = vmul.f32 1.0, %v146
    %v148 = vmul.f32 %v143, %v147
    %149 = vst [vmem:[#allocation7] sm:$0xff] %v148
    // Predicated region
    $region22: #{tpu_custom_call.1} parent=1 // pred_check
      _
    $region23: #{tpu_custom_call.1} parent=1 // pred_check_branch
      %151 = sbr.rel (0) target = $region25
    $region24: #{tpu_custom_call.1} parent=1 // pred_region
      %s153 = ssub.s32 128, 128
      %154 = vsyncadd [#allocation4], %s153
      %s156 = sshll.u32 [#allocation7], 4
      %s157 = int_to_ptr.vmem [resolvable:$true] %s156
      %159 = dma.vmem_to_hbm [thread:$0]  %s157, 128, %s3, [#allocation4]
    $region25: #{tpu_custom_call.1} parent=1 // pred_fallthru
      _
    // Predicated region
    $region26: #{tpu_custom_call.1} parent=1 // pred_check
      _
    $region27: #{tpu_custom_call.1} parent=1 // pred_check_branch
      %161 = sbr.rel (0) target = $region29
    $region28: #{tpu_custom_call.1} parent=1 // pred_region
      %162 = dma.done [#allocation4], 128
    $region29: #{tpu_custom_call.1} parent=1 // pred_fallthru
      _
    %163 = vsyncpa [#allocation3], 1
    %164 = vsyncpa [#allocation6], 1
    %165 = vsyncpa [#allocation4], 1

</llo_original>
